<compile_context>
chip_gen: v7x
topology: tpu7x:2x2x1
jax: 0.10.0
libtpu: 0.0.40
codegen_flags: <defaults>
</compile_context>

<pallas_src>
import jax
import jax.numpy as jnp
from jax.experimental import pallas as pl
from jax.experimental.pallas import tpu as pltpu


_MAX_ROW_TILE = 2048  # max rows of the cos/sin cache computed per grid step


def _round_up(x: int, m: int) -> int:
    return -(-x // m) * m


def _choose_row_tile(cache_len: int, out_dtype) -> tuple[int, int, int]:
    """Pick (rows_per_tile, n_tiles, padded_len) for the cache grid."""
    # sublane-granularity alignment for the output dtype (8 for f32, 16 for bf16)
    align = max(8, 32 // jnp.dtype(out_dtype).itemsize)
    padded = _round_up(cache_len, align)
    if padded <= align:
        return padded, 1, padded
    # >= 2 tiles whenever possible so the "parallel" axis can shard across both
    # TensorCores on v7x; capped at _MAX_ROW_TILE so each step is DMA-efficient
    # yet trivially fits VMEM on all generations (<= ~4 MiB per buffer).
    tr = min(_MAX_ROW_TILE, _round_up(pl.cdiv(padded, 2), align))
    n_tiles = pl.cdiv(padded, tr)
    return tr, n_tiles, n_tiles * tr


def _cos_sin_tile(inv_freq_ref, n_rows: int, out_dtype):
    """cos/sin of t[row] * inv_freq for the current grid tile, cast to out_dtype."""
    half = inv_freq_ref.shape[1]
    row0 = pl.program_id(0) * n_rows
    t = jax.lax.broadcasted_iota(jnp.int32, (n_rows, half), 0) + row0
    freqs = t.astype(jnp.float32) * inv_freq_ref[...]            # (n_rows, half)
    # cast BEFORE any concatenate/store: half the cast work / vreg pressure
    return jnp.cos(freqs).astype(out_dtype), jnp.sin(freqs).astype(out_dtype)


def _rope_packed_kernel(inv_freq_ref, packed_ref):
    # packed_ref: (TR, 4*half), lane layout [cos(emb) | sin(emb)] with
    # emb = concat(freqs, freqs). Used when dim % 128 != 0.
    c, s = _cos_sin_tile(inv_freq_ref, packed_ref.shape[0], packed_ref.dtype)
    packed_ref[...] = jnp.concatenate([c, c, s, s], axis=-1)


def _rope_split_kernel(inv_freq_ref, cos_ref, sin_ref):
    # cos_ref / sin_ref: (TR, dim) with dim % 128 == 0 -> unmasked lane-dense
    # stores and no wrapper-side lane slices.
    half = inv_freq_ref.shape[1]
    c, s = _cos_sin_tile(inv_freq_ref, cos_ref.shape[0], cos_ref.dtype)
    if half % 128 == 0:
        # 128-aligned halves: direct sliced stores, no lane concatenate
        cos_ref[:, :half] = c
        cos_ref[:, half:] = c
        sin_ref[:, :half] = s
        sin_ref[:, half:] = s
    else:
        cos_ref[...] = jnp.concatenate([c, c], axis=-1)
        sin_ref[...] = jnp.concatenate([s, s], axis=-1)


def rope_cos_sin_cache(inv_freq: jnp.ndarray, cache_len: int,
                       out_dtype=jnp.float32) -> tuple[jnp.ndarray, jnp.ndarray]:
    """Compute cos/sin caches of shape (>=cache_len, dim) with a Pallas kernel.

    Returned arrays may contain a few padded rows beyond cache_len; those rows
    hold valid cos/sin values for positions >= cache_len and are simply never
    used (callers slice [:seq_len]).
    """
    half = int(inv_freq.shape[0])
    dim = 2 * half
    inv_freq_2d = inv_freq.reshape(1, half).astype(jnp.float32)

    tr, n_tiles, padded_len = _choose_row_tile(cache_len, out_dtype)
    in_specs = [pl.BlockSpec((1, half), lambda i: (0, 0))]
    cparams = pltpu.CompilerParams(dimension_semantics=("parallel",))

    if dim % 128 == 0:
        # two separate lane-dense outputs: no packed layout, no wrapper slices
        cos, sin = pl.pallas_call(
            _rope_split_kernel,
            out_shape=(jax.ShapeDtypeStruct((padded_len, dim), out_dtype),
                       jax.ShapeDtypeStruct((padded_len, dim), out_dtype)),
            grid=(n_tiles,),
            in_specs=in_specs,
            out_specs=[pl.BlockSpec((tr, dim), lambda i: (i, 0)),
                       pl.BlockSpec((tr, dim), lambda i: (i, 0))],
            compiler_params=cparams,
        )(inv_freq_2d)
    else:
        width = 2 * dim                                  # packed [cos | sin]
        packed = pl.pallas_call(
            _rope_packed_kernel,
            out_shape=jax.ShapeDtypeStruct((padded_len, width), out_dtype),
            grid=(n_tiles,),
            in_specs=in_specs,
            out_specs=pl.BlockSpec((tr, width), lambda i: (i, 0)),
            compiler_params=cparams,
        )(inv_freq_2d)
        cos = packed[:, :dim]
        sin = packed[:, dim:]
    return cos, sin


class Rope:
    """JAX/Pallas port of mmdet.models.backbones.eva.Rope (forward semantics only)."""

    def __init__(self, dim: int, max_position_embeddings: int = 2048,
                 base: float = 10000.0, dtype=jnp.float32):
        assert dim % 2 == 0, "Rope dim must be even"
        self.dim = dim
        self.base = base
        # inv_freq = 1 / base ** (arange(0, dim, 2) / dim)
        self.inv_freq = 1.0 / (base ** (jnp.arange(0, dim, 2, dtype=jnp.float32) / dim))
        self.max_seq_len_cached = max_position_embeddings
        self._cache_dtype = jnp.dtype(dtype)
        self._build_cache(self.max_seq_len_cached, self._cache_dtype)

    def _build_cache(self, seq_len: int, dtype):
        self.max_seq_len_cached = seq_len
        self._cache_dtype = jnp.dtype(dtype)
        cos, sin = rope_cos_sin_cache(self.inv_freq, seq_len, out_dtype=dtype)
        # cos/sin may hold a few extra (valid) padded rows; never returned.
        self.cos_cached = cos[None, None, :, :]         # (1, 1, >=seq_len, dim)
        self.sin_cached = sin[None, None, :, :]

    def __call__(self, x: jnp.ndarray, seq_len: int | None = None):
        if seq_len is None:
            seq_len = x.shape[1]
        # TODO(synk): lazy rebuild / dtype switch is a Python-side effect; it will
        # not trigger correctly if __call__ is traced under jax.jit with a traced
        # seq_len or a dtype change.
        if seq_len > self.max_seq_len_cached or jnp.dtype(x.dtype) != self._cache_dtype:
            self._build_cache(max(seq_len, self.max_seq_len_cached), x.dtype)
        B = x.shape[0]
        cos = self.cos_cached[:, :, :seq_len, :]
        sin = self.sin_cached[:, :, :seq_len, :]
        # Matches torch `.expand(B, -1, -1, -1)` output shape. Under jax.jit this
        # broadcast fuses into the consumer (no copy); in eager it materializes,
        # so call sites should be jitted to avoid per-call B-fold cache copies.
        cos = jnp.broadcast_to(cos, (B, 1, seq_len, self.dim))
        sin = jnp.broadcast_to(sin, (B, 1, seq_len, self.dim))
        return cos, sin


def _reference_tables(inv_freq, cache_len):
    t = jnp.arange(cache_len, dtype=jnp.float32)
    freqs = jnp.einsum("i,j->ij", t, inv_freq)
    emb = jnp.concatenate([freqs, freqs], axis=-1)
    return jnp.cos(emb), jnp.sin(emb)


if __name__ == "__main__":
    # --- small primary check (packed path, dim=32, two row tiles) -------------
    B, S, H = 2, 8, 32            # batch, seq, hidden; Rope dim == H here
    dim = H
    max_pos = 16

    key = jax.random.PRNGKey(0)
    x = jax.random.normal(key, (B, S, H), dtype=jnp.float32)

    rope = Rope(dim, max_position_embeddings=max_pos)
    cos, sin = jax.block_until_ready(rope(x))

    cos_tab, sin_tab = _reference_tables(rope.inv_freq, max_pos)
    cos_ref = jnp.broadcast_to(cos_tab[None, None, :S, :], (B, 1, S, dim))
    sin_ref = jnp.broadcast_to(sin_tab[None, None, :S, :], (B, 1, S, dim))
    assert cos.shape == (B, 1, S, dim) and sin.shape == (B, 1, S, dim)
    assert jnp.allclose(cos, cos_ref, atol=1e-5)
    assert jnp.allclose(sin, sin_ref, atol=1e-5)

    # --- multi-tile check (row-tiled, padded grid path; dim=64 packed) --------
    dim2, max_pos2, S2 = 64, 600, 600
    x2 = jax.random.normal(jax.random.PRNGKey(1), (1, S2, dim2), dtype=jnp.float32)
    rope2 = Rope(dim2, max_position_embeddings=max_pos2)
    cos2, sin2 = jax.block_until_ready(rope2(x2))
    cos2_tab, sin2_tab = _reference_tables(rope2.inv_freq, max_pos2)
    assert jnp.allclose(cos2[0, 0], cos2_tab[:S2], atol=1e-4)
    assert jnp.allclose(sin2[0, 0], sin2_tab[:S2], atol=1e-4)

    # --- bf16 cache path (dtype emitted by the kernel, no per-call cast) ------
    rope3 = Rope(dim2, max_position_embeddings=128, dtype=jnp.bfloat16)
    x3 = jax.random.normal(jax.random.PRNGKey(2), (1, 64, dim2), dtype=jnp.bfloat16)
    cos3, sin3 = jax.block_until_ready(rope3(x3))
    assert cos3.dtype == jnp.bfloat16 and sin3.dtype == jnp.bfloat16
    cos3_tab, sin3_tab = _reference_tables(rope3.inv_freq, 128)
    assert jnp.allclose(cos3[0, 0].astype(jnp.float32), cos3_tab[:64], atol=1e-2)
    assert jnp.allclose(sin3[0, 0].astype(jnp.float32), sin3_tab[:64], atol=1e-2)

    # --- split-output path, dim=128 (two lane-dense outputs, concat stores) ---
    dim4, max_pos4, S4 = 128, 32, 32
    x4 = jax.random.normal(jax.random.PRNGKey(3), (1, S4, dim4), dtype=jnp.float32)
    rope4 = Rope(dim4, max_position_embeddings=max_pos4)
    cos4, sin4 = jax.block_until_ready(rope4(x4))
    cos4_tab, sin4_tab = _reference_tables(rope4.inv_freq, max_pos4)
    assert jnp.allclose(cos4[0, 0], cos4_tab[:S4], atol=1e-5)
    assert jnp.allclose(sin4[0, 0], sin4_tab[:S4], atol=1e-5)

    # --- split-output path, dim=256 (half % 128 == 0 -> sliced stores) --------
    dim5, max_pos5, S5 = 256, 32, 24
    x5 = jax.random.normal(jax.random.PRNGKey(4), (1, S5, dim5), dtype=jnp.float32)
    rope5 = Rope(dim5, max_position_embeddings=max_pos5)
    cos5, sin5 = jax.block_until_ready(rope5(x5))
    cos5_tab, sin5_tab = _reference_tables(rope5.inv_freq, max_pos5)
    assert jnp.allclose(cos5[0, 0], cos5_tab[:S5], atol=1e-5)
    assert jnp.allclose(sin5[0, 0], sin5_tab[:S5], atol=1e-5)

    print("KERNEL_OK")
</pallas_src>

<mosaic_0001>
module attributes {stable_mosaic.version = 11 : i64} {
  func.func @_rope_packed_kernel(%arg0: i32, %arg1: memref<1x16xf32, #tpu.memory_space<vmem>>, %arg2: memref<8x64xf32, #tpu.memory_space<vmem>>) attributes {dimension_semantics = [#tpu.dimension_semantics<parallel>], iteration_bounds = array<i64: 2>, scalar_prefetch = 0 : i64, scratch_operands = 0 : i64, tpu.core_type = #tpu.core_type<tc>, window_params = [{pipeline_mode = #tpu.pipeline_mode<synchronous>, transform_indices = @transform_0, window_bounds = array<i64: 1, 16>}, {transform_indices = @transform_1, window_bounds = array<i64: 8, 64>}]} {
    %c8_i32 = arith.constant 8 : i32
    %0 = arith.muli %arg0, %c8_i32 : i32
    %1 = tpu.iota {dimensions = array<i32: 0>} : vector<8x16xi32>
    %2 = vector.broadcast %0 : i32 to vector<8x16xi32>
    %3 = arith.addi %1, %2 : vector<8x16xi32>
    %4 = arith.sitofp %3 : vector<8x16xi32> to vector<8x16xf32>
    %c0 = arith.constant 0 : index
    %c0_0 = arith.constant 0 : index
    %5 = vector.load %arg1[%c0, %c0_0] : memref<1x16xf32, #tpu.memory_space<vmem>>, vector<1x16xf32>
    %6 = vector.broadcast %5 : vector<1x16xf32> to vector<8x16xf32>
    %7 = arith.mulf %4, %6 : vector<8x16xf32>
    %8 = math.cos %7 : vector<8x16xf32>
    %9 = math.sin %7 : vector<8x16xf32>
    %10 = tpu.concatenate %8, %8, %9, %9 in 1 : vector<8x16xf32>, vector<8x16xf32>, vector<8x16xf32>, vector<8x16xf32> -> vector<8x64xf32>
    %c0_1 = arith.constant 0 : index
    %c0_2 = arith.constant 0 : index
    %11 = vector.load %arg2[%c0_1, %c0_2] : memref<8x64xf32, #tpu.memory_space<vmem>>, vector<8x64xf32>
    tpu.vector_store %arg2[%c0_1, %c0_2], %10 {strides = array<i32>} : memref<8x64xf32, #tpu.memory_space<vmem>>, vector<8x64xf32>,
    return
  }
  func.func @transform_0(%arg0: i32) -> (i32, i32) {
    %c0_i32 = arith.constant 0 : i32
    %c0_i32_0 = arith.constant 0 : i32
    %c0_i32_1 = arith.constant 0 : i32
    return %c0_i32, %c0_i32_0 : i32, i32
  }
  func.func @transform_1(%arg0: i32) -> (i32, i32) {
    %c0_i32 = arith.constant 0 : i32
    %c0_i32_0 = arith.constant 0 : i32
    return %arg0, %c0_i32 : i32, i32
  }
}

</mosaic_0001>

<llo_original>
// kernel: tpu_custom_call.1
$region0: #{tpu_custom_call.1}
  #allocation0 [shape = 'u32[]', space=smem, size = 0x4, offset = 0x4, fixed_abs, tag = 'smem constant byte address 0x4 - core index']
  #allocation1 [shape = 'u32[144,128]{1,0:T(1,128)}', space=vmem, size = 0x12000, scoped, tag = 'internal scratch']
  %s0 = inlined_call_operand.hbm [shape: f32[1,16], index: 0, kind: input, shape index: {}]
  %s1 = inlined_call_operand.hbm [shape: f32[16,64], index: 1, kind: output, shape index: {}]
  %s2 = sld [smem:[#allocation0]]
  $region41: #{tpu_custom_call.1} parent=0
    _
  %s4 = ssub.s32 1, %s2
  %s5 = scalar_select 0, %s4, %s2
  $region1: #{tpu_custom_call.1} parent=0
    #allocation2 [shape = 'u8[512]{0}', space=vmem, size = 0x400, scoped, tag = 'input window, operand 0, single buffered']
    #allocation3 [shape = 's32[2]{0}', space=sflag, size = 0x8, scoped, tag = 'scoped memory for tpu_custom_call.1']
    #allocation4 [shape = 's32[2]{0}', space=sflag, size = 0x8, scoped, tag = 'scoped memory for tpu_custom_call.1']
    #allocation5 [shape = 'u8[8192]{0}', space=vmem, size = 0x2000, scoped, tag = 'output window, operand 0']
    %6 = vsyncpa [#allocation3], 0
    %7 = vsyncpa [#allocation4], 0
    %s8 = scalar_lea.sflag [#allocation4], 1
    %9 = vsyncpa %s8, 0
    loop: start=0, step=1, limit=4
    $region2: #{tpu_custom_call.1} parent=1 // loop_pre_header
      _
    $region3: #{tpu_custom_call.1} parent=1 // loop_header
      %s11 = sphi 0, %s15
      %p12 = scmp.ge.s32.totalorder %s11, 4
      %s19 = sphi 0, %s19
      %s21 = sphi 0, %s19
      %s22 = sphi 0, %s21
      %s36 = sphi 0, %s22
      %s42 = sphi 0, %s44
      %s45 = sphi 0, %s42
      %s46 = sphi 0, %s45
      %s62 = sphi 0, %s46
    $region4: #{tpu_custom_call.1} parent=1 // loop_header_branch
      %14 = sbr.rel (%p12) target = $region8
    $region5: #{tpu_custom_call.1} parent=1 // loop_body
      %s16 = ssub.s32 %s11, 1
      %s17 = ssub.s32 %s11, 2
      %s18 = sadd.s32 %s11, 1
      %s20 = sadd.s32 %s19, 1
      %p23 = scmp.eq.s32.totalorder %s11, 1
      %p24 = scmp.ne.s32.totalorder %s19, %s21
      %p25 = scmp.eq.s32.totalorder %s11, 0
      %p26 = por %p24, %p25
      %p27 = scmp.ne.s32.totalorder %s19, %s21
      %p28 = scmp.eq.s32.totalorder %s16, 1
      %p29 = por %p27, %p28
      %p30 = scmp.ne.s32.totalorder %s21, %s22
      %p31 = scmp.eq.s32.totalorder %s16, 0
      %p32 = por %p30, %p31
      %p33 = scmp.ne.s32.totalorder %s21, %s22
      %p34 = scmp.eq.s32.totalorder %s17, 1
      %p35 = por %p33, %p34
      %p37 = scmp.ne.s32.totalorder %s22, %s36
      %p38 = scmp.eq.s32.totalorder %s17, 0
      %p39 = por %p37, %p38
      %s40 = ssub.s32 %s11, %s18
      %p41 = scmp.eq.s32.totalorder %s40, 0
      %s43 = sadd.s32 %s42, 1
      %s44 = scalar_select %p41, %s42, %s43
      %p47 = pneg %p41
      %p48 = scmp.eq.s32.totalorder %s11, 1
      %p49 = por %p47, %p48
      %p50 = scmp.ne.s32.totalorder %s42, %s45
      %p51 = scmp.eq.s32.totalorder %s11, 0
      %p52 = por %p50, %p51
      %p53 = scmp.ne.s32.totalorder %s42, %s45
      %p54 = scmp.eq.s32.totalorder %s16, 1
      %p55 = por %p53, %p54
      %p56 = scmp.ne.s32.totalorder %s45, %s46
      %p57 = scmp.eq.s32.totalorder %s16, 0
      %p58 = por %p56, %p57
      %p59 = scmp.ne.s32.totalorder %s45, %s46
      %p60 = scmp.eq.s32.totalorder %s17, 1
      %p61 = por %p59, %p60
      %p63 = scmp.ne.s32.totalorder %s46, %s62
      %p64 = scmp.eq.s32.totalorder %s17, 0
      %p65 = por %p63, %p64
      %p66 = scmp.le.s32.totalorder 1, %s11
      %p67 = scmp.lt.s32.totalorder %s11, 3
      %p68 = pnand %p66, %p67
      %p69 = pneg %p68
      // Predicated region
      $region9: #{tpu_custom_call.1} parent=5 // pred_check
        _
      $region10: #{tpu_custom_call.1} parent=5 // pred_check_branch
        %71 = sbr.rel (%p68) target = $region12
      $region11: #{tpu_custom_call.1} parent=5 // pred_region
        %s72 = ssub.s32 %s11, 1
        // Predicated region
        $region13: #{tpu_custom_call.1} parent=11 // pred_check
          %p73 = pneg %p32
        $region14: #{tpu_custom_call.1} parent=11 // pred_check_branch
          %75 = sbr.rel (%p73) target = $region16
        $region15: #{tpu_custom_call.1} parent=11 // pred_region
          %s77 = ssub.s32 16, 16
          %78 = vsyncadd [#allocation3], %s77
          %s80 = sshll.u32 [#allocation2], 4
          %s81 = int_to_ptr.vmem [resolvable:$true] %s80
          %83 = dma.hbm_to_vmem [thread:$0]  %s0, 16, %s81, [#allocation3]
        $region16: #{tpu_custom_call.1} parent=11 // pred_fallthru
          _
      $region12: #{tpu_custom_call.1} parent=5 // pred_fallthru
        _
      %p84 = scmp.lt.s32.totalorder %s11, 2
      // Predicated region
      $region17: #{tpu_custom_call.1} parent=5 // pred_check
        %p85 = pneg %p84
      $region18: #{tpu_custom_call.1} parent=5 // pred_check_branch
        %87 = sbr.rel (%p85) target = $region20
      $region19: #{tpu_custom_call.1} parent=5 // pred_region
        _
      $region20: #{tpu_custom_call.1} parent=5 // pred_fallthru
        _
      %p88 = scmp.le.s32.totalorder 1, %s11
      %p89 = scmp.lt.s32.totalorder %s11, 3
      %p90 = pnand %p88, %p89
      %p91 = pneg %p90
      // Predicated region
      $region21: #{tpu_custom_call.1} parent=5 // pred_check
        _
      $region22: #{tpu_custom_call.1} parent=5 // pred_check_branch
        %93 = sbr.rel (%p90) target = $region24
      $region23: #{tpu_custom_call.1} parent=5 // pred_region
        %s94 = ssub.s32 %s11, 1
        // Predicated region
        $region25: #{tpu_custom_call.1} parent=23 // pred_check
          %p95 = pneg %p32
        $region26: #{tpu_custom_call.1} parent=23 // pred_check_branch
          %97 = sbr.rel (%p95) target = $region28
        $region27: #{tpu_custom_call.1} parent=23 // pred_region
          %98 = dma.done [#allocation3], 16
        $region28: #{tpu_custom_call.1} parent=23 // pred_fallthru
          _
        %p99 = pneg %p32
        %p100 = pneg %p29
        %p101 = pneg %p58
        %p102 = pneg %p55
        %s103 = sand.u32 %s45, 1
        %s104 = scalar_lea.sflag [#allocation4], %s103
        %s105 = sand.u32 %s45, 1
        %s106 = smul.addr %s105, 8
        %s107 = scalar_lea.vmem [#allocation5], %s106
        %s108 = smul.u32 %s16, 8
        %v109 = vlaneseq
        %v110 = vshrl.u32 %v109, 7
        %v111 = vstv %s108
        %v112 = vadd.s32 %v110, %v111
        %v113 = vcvt.s32.f32 %v112
        %v114 = vld [vmem:[#allocation2] sm:$0x1]
        %v116 = vlaneseq
        %v117 = vshrl.u32 %v116, 7
        %v118 = vsub.s32 0, %v117
        %v119 = vrot.slane %v114, %v118
        %v121 = vmul.f32 %v113, %v119
        %v122 = vand.u32 2147483647, %v121
        %vm123 = vcmp.le.f32.partialorder %v122, 0.7853982
        %vm124 = vcmp.lt.s32.totalorder %v121, 0
        %v125 = vand.u32 %v121, 2139095040
        %v126 = vshrl.u32 %v125, 23
        %v127 = vsub.s32 %v126, 127
        %v128 = vand.u32 2147483647, %v121
        %v129 = vand.u32 %v128, 8388607
        %v130 = vor.u32 %v129, 8388608
        %v131 = vsub.s32 0, %v130
        %v132 = vadd.s32 %v127, 1
        %vm133 = vcmp.gt.s32.totalorder %v132, 0
        %v134 = vsel %vm133, %v132, 0
        %v135 = vshrl.u32 %v134, 5
        %v136 = vand.u32 %v134, 31
        %v137 = vsub.s32 32, %v136
        %v138 = vshrl.u32 683565275, %v137
        %v139 = vshll.u32 683565275, %v136
        %v140 = vshrl.u32 2475754826, %v137
        %v141 = vor.u32 %v139, %v140
        %v142 = vshll.u32 2475754826, %v136
        %v143 = vshrl.u32 2131351028, %v137
        %v144 = vor.u32 %v142, %v143
        %v145 = vshll.u32 2131351028, %v136
        %v146 = vshrl.u32 2102212464, %v137
        %v147 = vor.u32 %v145, %v146
        %v148 = vshll.u32 2102212464, %v136
        %v149 = vshrl.u32 920167782, %v137
        %v150 = vor.u32 %v148, %v149
        %v151 = vshll.u32 920167782, %v136
        %v152 = vshrl.u32 1326507024, %v137
        %v153 = vor.u32 %v151, %v152
        %vm154 = vcmp.lt.s32.totalorder %v135, 1
        %vm155 = vcmp.lt.s32.totalorder %v135, 2
        %vm156 = vcmp.lt.s32.totalorder %v135, 3
        %vm157 = vcmp.lt.s32.totalorder %v135, 4
        %v158 = vsel %vm154, %v138, %v141
        %v159 = vsel %vm157, %v147, 2102212464
        %v160 = vsel %vm156, %v144, %v159
        %v161 = vsel %vm155, %v158, %v160
        %v162 = vsel %vm154, %v141, %v144
        %v163 = vsel %vm157, %v150, 920167782
        %v164 = vsel %vm156, %v147, %v163
        %v165 = vsel %vm155, %v162, %v164
        %v166 = vsel %vm154, %v144, %v147
        %v167 = vsel %vm157, %v153, 1326507024
        %v168 = vsel %vm156, %v150, %v167
        %v169 = vsel %vm155, %v166, %v168
        %v170 = vshll.u32 %v130, 8
        %v171 = vmul.u32.u64.compose %v170, %v169
        %v172 = vextract.low.u32 %v171
        %v173 = vextract.high.u32 %v171
        %v174 = vmul.u32.u64.compose %v170, %v165
        %v175 = vextract.low.u32 %v174
        %v176 = vextract.high.u32 %v174
        %v177 = vmul.u32 %v170, %v161
        %v178 = vadd.s32 %v173, %v175
        %vm179 = vc.u32 %v173, %v175
        %v180 = vadd.s32 %v176, 1
        %v181 = vsel %vm179, %v180, %v176
        %v182 = vadd.s32 %v177, %v181
        %v183 = vadd.s32 %v182, 536870912
        %v184 = vshrl.u32 %v183, 30
        %v185 = vshll.u32 %v184, 30
        %v186 = vsub.s32 %v182, %v185
        %vm187 = vcmp.lt.s32.totalorder %v186, 0
        %v188 = vsub.s32 0, %v186
        %v189 = vsel %vm187, %v188, %v186
        %v190 = vclz %v189
        %v191 = vsub.s32 %v190, 2
        %vm192 = vcmp.gt.s32.totalorder 0, %v191
        %v193 = vsel %vm192, 0, %v191
        %v194 = vsub.s32 32, %v193
        %v195 = vshll.u32 %v186, %v193
        %v196 = vshrl.u32 %v178, %v194
        %v197 = vor.u32 %v195, %v196
        %v198 = vsub.s32 4294967266, %v193
        %v199 = vadd.s32 %v198, 127
        %v200 = vshll.u32 %v199, 23
        %v201 = vor.u32 4788187, %v200
        %v202 = vand.u32 2147483647, %v201
        %v204 = vcvt.s32.f32 %v197
        %v205 = vmul.f32 %v204, %v202
        %v206 = vxor.u32 %v205, 2147483648
        %v207 = vsel %vm124, %v206, %v205
        %v208 = vsub.s32 4, %v184
        %v209 = vsel %vm124, %v208, %v184
        %v210 = vsel %vm123, %v121, %v207
        %v211 = vsel %vm123, 0, %v209
        %v212 = vcosq.f32.pop %v210
        %v213 = vsinq.f32.pop %v210
        %vm214 = vweird.f32 %v121
        %v215 = vand.u32 %v211, 3
        %vm216 = vcmp.lt.s32.totalorder %v215, 2
        %vm217 = vcmp.eq.s32.totalorder %v215, 0
        %v218 = vxor.u32 %v213, 2147483648
        %v219 = vsel %vm217, %v212, %v218
        %vm220 = vcmp.eq.s32.totalorder %v215, 2
        %v221 = vxor.u32 %v212, 2147483648
        %v222 = vsel %vm220, %v221, %v213
        %v223 = vsel %vm216, %v219, %v222
        %v224 = vsel %vm214, nan, %v223
        %v225 = vand.u32 2147483647, %v121
        %vm226 = vcmp.le.f32.partialorder %v225, 0.7853982
        %vm227 = vcmp.lt.s32.totalorder %v121, 0
        %v228 = vand.u32 %v121, 2139095040
        %v229 = vshrl.u32 %v228, 23
        %v230 = vsub.s32 %v229, 127
        %v231 = vand.u32 2147483647, %v121
        %v232 = vand.u32 %v231, 8388607
        %v233 = vor.u32 %v232, 8388608
        %v234 = vsub.s32 0, %v233
        %v235 = vadd.s32 %v230, 1
        %vm236 = vcmp.gt.s32.totalorder %v235, 0
        %v237 = vsel %vm236, %v235, 0
        %v238 = vshrl.u32 %v237, 5
        %v239 = vand.u32 %v237, 31
        %v240 = vsub.s32 32, %v239
        %v241 = vshrl.u32 683565275, %v240
        %v242 = vshll.u32 683565275, %v239
        %v243 = vshrl.u32 2475754826, %v240
        %v244 = vor.u32 %v242, %v243
        %v245 = vshll.u32 2475754826, %v239
        %v246 = vshrl.u32 2131351028, %v240
        %v247 = vor.u32 %v245, %v246
        %v248 = vshll.u32 2131351028, %v239
        %v249 = vshrl.u32 2102212464, %v240
        %v250 = vor.u32 %v248, %v249
        %v251 = vshll.u32 2102212464, %v239
        %v252 = vshrl.u32 920167782, %v240
        %v253 = vor.u32 %v251, %v252
        %v254 = vshll.u32 920167782, %v239
        %v255 = vshrl.u32 1326507024, %v240
        %v256 = vor.u32 %v254, %v255
        %vm257 = vcmp.lt.s32.totalorder %v238, 1
        %vm258 = vcmp.lt.s32.totalorder %v238, 2
        %vm259 = vcmp.lt.s32.totalorder %v238, 3
        %vm260 = vcmp.lt.s32.totalorder %v238, 4
        %v261 = vsel %vm257, %v241, %v244
        %v262 = vsel %vm260, %v250, 2102212464
        %v263 = vsel %vm259, %v247, %v262
        %v264 = vsel %vm258, %v261, %v263
        %v265 = vsel %vm257, %v244, %v247
        %v266 = vsel %vm260, %v253, 920167782
        %v267 = vsel %vm259, %v250, %v266
        %v268 = vsel %vm258, %v265, %v267
        %v269 = vsel %vm257, %v247, %v250
        %v270 = vsel %vm260, %v256, 1326507024
        %v271 = vsel %vm259, %v253, %v270
        %v272 = vsel %vm258, %v269, %v271
        %v273 = vshll.u32 %v233, 8
        %v274 = vmul.u32.u64.compose %v273, %v272
        %v275 = vextract.low.u32 %v274
        %v276 = vextract.high.u32 %v274
        %v277 = vmul.u32.u64.compose %v273, %v268
        %v278 = vextract.low.u32 %v277
        %v279 = vextract.high.u32 %v277
        %v280 = vmul.u32 %v273, %v264
        %v281 = vadd.s32 %v276, %v278
        %vm282 = vc.u32 %v276, %v278
        %v283 = vadd.s32 %v279, 1
        %v284 = vsel %vm282, %v283, %v279
        %v285 = vadd.s32 %v280, %v284
        %v286 = vadd.s32 %v285, 536870912
        %v287 = vshrl.u32 %v286, 30
        %v288 = vshll.u32 %v287, 30
        %v289 = vsub.s32 %v285, %v288
        %vm290 = vcmp.lt.s32.totalorder %v289, 0
        %v291 = vsub.s32 0, %v289
        %v292 = vsel %vm290, %v291, %v289
        %v293 = vclz %v292
        %v294 = vsub.s32 %v293, 2
        %vm295 = vcmp.gt.s32.totalorder 0, %v294
        %v296 = vsel %vm295, 0, %v294
        %v297 = vsub.s32 32, %v296
        %v298 = vshll.u32 %v289, %v296
        %v299 = vshrl.u32 %v281, %v297
        %v300 = vor.u32 %v298, %v299
        %v301 = vsub.s32 4294967266, %v296
        %v302 = vadd.s32 %v301, 127
        %v303 = vshll.u32 %v302, 23
        %v304 = vor.u32 4788187, %v303
        %v305 = vand.u32 2147483647, %v304
        %v307 = vcvt.s32.f32 %v300
        %v308 = vmul.f32 %v307, %v305
        %v309 = vxor.u32 %v308, 2147483648
        %v310 = vsel %vm227, %v309, %v308
        %v311 = vsub.s32 4, %v287
        %v312 = vsel %vm227, %v311, %v287
        %v313 = vsel %vm226, %v121, %v310
        %v314 = vsel %vm226, 0, %v312
        %v315 = vcosq.f32.pop %v313
        %v316 = vsinq.f32.pop %v313
        %vm317 = vweird.f32 %v121
        %v318 = vadd.s32 %v314, 3
        %v319 = vand.u32 %v318, 3
        %vm320 = vcmp.lt.s32.totalorder %v319, 2
        %vm321 = vcmp.eq.s32.totalorder %v319, 0
        %v322 = vxor.u32 %v316, 2147483648
        %v323 = vsel %vm321, %v315, %v322
        %vm324 = vcmp.eq.s32.totalorder %v319, 2
        %v325 = vxor.u32 %v315, 2147483648
        %v326 = vsel %vm324, %v325, %v316
        %v327 = vsel %vm320, %v323, %v326
        %v328 = vsel %vm317, nan, %v327
        %330 = vrot.lane.b32.xlu0 %v224, 16
        %v331 = vpop.permute.xlu0 %330
        %334 = vrot.lane.b32.xlu0 %v328, 32
        %v335 = vpop.permute.xlu0 %334
        %337 = vrot.lane.b32.xlu0 %v328, 48
        %v338 = vpop.permute.xlu0 %337
        %vm340 = vcmask 130048
        %v341 = vsel %vm340, %v224, %v331
        %vm342 = vcmask 261120
        %v343 = vsel %vm342, %v341, %v335
        %vm344 = vcmask 392192
        %v345 = vsel %vm344, %v343, %v338
        %vm346 = vcmask 523264
        %347 = vst.msk [vmem:[%s107] sm:$0xff] %vm346, %v345
        %s348 = sand.u32 %s45, 1
        %s349 = scalar_lea.sflag [#allocation4], %s348
        %s350 = sand.u32 %s45, 1
        %s351 = smul.addr %s350, 8
        %s352 = scalar_lea.vmem [#allocation5], %s351
        // Predicated region
        $region29: #{tpu_custom_call.1} parent=23 // pred_check
          %p353 = pneg %p55
        $region30: #{tpu_custom_call.1} parent=23 // pred_check_branch
          %355 = sbr.rel (%p353) target = $region32
        $region31: #{tpu_custom_call.1} parent=23 // pred_region
          %s357 = ssub.s32 128, 128
          %358 = vsyncadd %s349, %s357
          %s359 = smul.addr %s16, 128
          %s360 = scalar_lea.hbm %s1, %s359
          %s362 = sshll.u32 %s352, 4
          %s363 = int_to_ptr.vmem [resolvable:$true] %s362
          %365 = dma.vmem_to_hbm [thread:$0]  %s363, 128, %s360, %s349
        $region32: #{tpu_custom_call.1} parent=23 // pred_fallthru
          _
      $region24: #{tpu_custom_call.1} parent=5 // pred_fallthru
        _
      %p366 = scmp.le.s32.totalorder 2, %s11
      // Predicated region
      $region33: #{tpu_custom_call.1} parent=5 // pred_check
        %p367 = pneg %p366
      $region34: #{tpu_custom_call.1} parent=5 // pred_check_branch
        %369 = sbr.rel (%p367) target = $region36
      $region35: #{tpu_custom_call.1} parent=5 // pred_region
        %s370 = ssub.s32 %s11, 2
        // Predicated region
        $region37: #{tpu_custom_call.1} parent=35 // pred_check
          %p371 = pneg %p61
        $region38: #{tpu_custom_call.1} parent=35 // pred_check_branch
          %373 = sbr.rel (%p371) target = $region40
        $region39: #{tpu_custom_call.1} parent=35 // pred_region
          %s374 = sand.u32 %s46, 1
          %s375 = scalar_lea.sflag [#allocation4], %s374
          %s376 = sand.u32 %s46, 1
          %s377 = smul.addr %s376, 8
          %s378 = scalar_lea.vmem [#allocation5], %s377
          %379 = dma.done %s375, 128
        $region40: #{tpu_custom_call.1} parent=35 // pred_fallthru
          _
      $region36: #{tpu_custom_call.1} parent=5 // pred_fallthru
        _
    $region6: #{tpu_custom_call.1} parent=1 // loop_footer
      %s15 = sadd.s32 1, %s11
    $region7: #{tpu_custom_call.1} parent=1 // loop_footer_branch
      %10 = sbr.rel target = $region3
    $region8: #{tpu_custom_call.1} parent=1 // loop_exit
      _
    %380 = vsyncpa [#allocation3], 1
    %s381 = scalar_lea.sflag [#allocation3], 1
    %382 = vsyncpa %s381, 1
    %383 = vsyncpa [#allocation4], 1
    %s384 = scalar_lea.sflag [#allocation4], 1
    %385 = vsyncpa %s384, 1

</llo_original>
